<compile_context>
chip_gen: v5e
topology: v5e:2x2
jax: 0.10.0
libtpu: 0.0.40
codegen_flags: <defaults>
</compile_context>

<pallas_src>
import jax
import jax.numpy as jnp
from jax.experimental import pallas as pl
from jax.experimental.pallas import tpu as pltpu


def _sam_kernel(inb_ref, wz_ref, b_ref, wca1_ref, wca2_ref, out_ref):
    """Processes a block of B packed images.

    inb_ref : (B, 10C, HW)  stacked [x ; 9 shifted, zero-padded phi taps]
    wz_ref  : (C, 10C)      folded weights (W3a@W2 | W3b@W1[kh,kw] ...)
    b_ref   : (C, 1)        folded bias  (W3a@b2 + W3b@b1 + b3)
    wca1_ref: (Crp, C)      SE squeeze (hidden dim zero-padded to a sublane tile)
    wca2_ref: (C, Crp)      SE excite
    out_ref : (B, C, HW)
    """
    wz = wz_ref[...]
    bias = b_ref[...]
    wca1 = wca1_ref[...]
    wca2 = wca2_ref[...]
    B = out_ref.shape[0]
    C = out_ref.shape[1]

    for b in range(B):  # static unroll: amortizes per-grid-step overhead
        # Single fused matmul, K = 10*C (replaces 10 small dots + 9 masked slices).
        z = jnp.dot(wz, inb_ref[b],
                    preferred_element_type=jnp.float32) + bias        # (C, HW)

        # CALayer squeeze-excite at a single 128-lane tile width.
        # NOTE: valid only because the full HW extent of each image is resident
        # in this grid step; tiling HW would require a two-pass mean.
        m = jnp.broadcast_to(jnp.mean(z, axis=1, keepdims=True), (C, 128))
        h = jnp.maximum(
            jnp.dot(wca1, m, preferred_element_type=jnp.float32), 0.0)  # (Crp, 128)
        s = jax.nn.sigmoid(
            jnp.dot(wca2, h, preferred_element_type=jnp.float32))       # (C, 128)

        # Per-channel gate (all 128 columns identical) broadcast across HW lanes.
        out_ref[b] = (z * s[:, :1]).astype(out_ref.dtype)


def _pick_batch_block(N, max_block=8):
    """Largest divisor of N that still leaves >= 2 grid steps (v7x has 2 TCs)."""
    target = max(1, min(max_block, N // 2))
    for b in range(target, 0, -1):
        if N % b == 0:
            return b
    return 1


def sam_forward(x, phi, params, batch_block=None):
    """x, phi: NCHW float32.  Same semantics as SAM.forward (returns NCHW)."""
    N, C, H, W = x.shape
    HW = H * W
    Cr = params['ca_w1'].shape[0]          # C // 8
    Crp = max(8, ((Cr + 7) // 8) * 8)      # pad SE hidden dim to a sublane tile
    B = batch_block if batch_block is not None else _pick_batch_block(N)
    assert N % B == 0

    # ---- partial im2col (wrapper side, tiny at these shapes): 9 shifted taps ----
    x_flat = x.reshape(N, C, HW)
    phi_p = jnp.pad(phi, ((0, 0), (0, 0), (1, 1), (1, 1)))
    taps = [phi_p[:, :, kh:kh + H, kw:kw + W].reshape(N, C, HW)
            for kh in range(3) for kw in range(3)]
    stacked = jnp.concatenate([x_flat] + taps, axis=1)                 # (N, 10C, HW)

    # ---- fold every conv weight into one (C, 10C) matrix + one bias (algebra) ----
    w1 = params['conv1_w']                         # (C, C, 3, 3)  OIHW
    b1 = params['conv1_b']
    w2 = params['conv2_w'][:, :, 0, 0]             # (C, C)
    b2 = params['conv2_b']
    w3 = params['conv3_w'][:, :, 0, 0]             # (C, 2C)
    b3 = params['conv3_b']
    w3a, w3b = w3[:, :C], w3[:, C:]                # conv2(x) part / conv1(phi) part

    wz = jnp.concatenate(
        [w3a @ w2] + [w3b @ w1[:, :, kh, kw] for kh in range(3) for kw in range(3)],
        axis=1)                                                        # (C, 10C)
    b_tot = (w3a @ b2 + w3b @ b1 + b3).reshape(C, 1)

    # Zero-padded squeeze-excite weights (extra rows/cols contribute exactly 0).
    wca1 = jnp.zeros((Crp, C), x.dtype).at[:Cr].set(params['ca_w1'][:, :, 0, 0])
    wca2 = jnp.zeros((C, Crp), x.dtype).at[:, :Cr].set(params['ca_w2'][:, :, 0, 0])

    def const_spec(shape):
        zeros = (0,) * len(shape)
        return pl.BlockSpec(shape, lambda n, _z=zeros: _z)

    out = pl.pallas_call(
        _sam_kernel,
        out_shape=jax.ShapeDtypeStruct((N, C, HW), x.dtype),
        grid=(N // B,),
        in_specs=[
            pl.BlockSpec((B, 10 * C, HW), lambda n: (n, 0, 0)),   # stacked input
            const_spec((C, 10 * C)),                              # folded weights
            const_spec((C, 1)),                                   # folded bias
            const_spec((Crp, C)),                                 # SE squeeze
            const_spec((C, Crp)),                                 # SE excite
        ],
        out_specs=pl.BlockSpec((B, C, HW), lambda n: (n, 0, 0)),
        compiler_params=pltpu.CompilerParams(
            dimension_semantics=("parallel",),
        ),
    )(stacked, wz, b_tot, wca1, wca2)

    return out.reshape(N, C, H, W)


def sam_reference(x, phi, params):
    """Pure-JAX NCHW reference mirroring the PyTorch forward exactly."""
    dn = ('NCHW', 'OIHW', 'NCHW')

    def conv2d(inp, w, b=None, pad=0):
        out = jax.lax.conv_general_dilated(inp, w, (1, 1), [(pad, pad), (pad, pad)],
                                           dimension_numbers=dn)
        if b is not None:
            out = out + b.reshape(1, -1, 1, 1)
        return out

    x_phi = conv2d(phi, params['conv1_w'], params['conv1_b'], pad=1)
    img = jnp.concatenate([conv2d(x, params['conv2_w'], params['conv2_b']), x_phi], axis=1)
    z = conv2d(img, params['conv3_w'], params['conv3_b'])
    y = jnp.mean(z, axis=(2, 3), keepdims=True)
    y = jax.nn.sigmoid(conv2d(jnp.maximum(conv2d(y, params['ca_w1']), 0.0), params['ca_w2']))
    return z * y


if __name__ == "__main__":
    # SAM(in_c=16) with CALayer reduction=8 -> hidden channels = 2
    N, C, H, W = 2, 16, 16, 16
    key = jax.random.PRNGKey(0)
    ks = jax.random.split(key, 10)

    params = {
        'conv1_w': 0.1 * jax.random.normal(ks[0], (C, C, 3, 3), jnp.float32),
        'conv1_b': 0.1 * jax.random.normal(ks[1], (C,), jnp.float32),
        'conv2_w': 0.1 * jax.random.normal(ks[2], (C, C, 1, 1), jnp.float32),
        'conv2_b': 0.1 * jax.random.normal(ks[3], (C,), jnp.float32),
        'conv3_w': 0.1 * jax.random.normal(ks[4], (C, 2 * C, 1, 1), jnp.float32),
        'conv3_b': 0.1 * jax.random.normal(ks[5], (C,), jnp.float32),
        'ca_w1': 0.1 * jax.random.normal(ks[6], (C // 8, C, 1, 1), jnp.float32),  # bias=False
        'ca_w2': 0.1 * jax.random.normal(ks[7], (C, C // 8, 1, 1), jnp.float32),  # bias=False
    }

    x = jax.random.normal(ks[8], (N, C, H, W), jnp.float32)
    phi = jax.random.normal(ks[9], (N, C, H, W), jnp.float32)

    out = jax.block_until_ready(sam_forward(x, phi, params))
    ref = jax.block_until_ready(sam_reference(x, phi, params))

    assert out.shape == (N, C, H, W)
    max_err = jnp.max(jnp.abs(out - ref))
    assert jnp.allclose(out, ref, atol=2e-4, rtol=2e-4), f"max abs err {max_err}"

    print("KERNEL_OK")
</pallas_src>

<mosaic_0001>
module attributes {stable_mosaic.version = 11 : i64} {
  func.func @_sam_kernel(%arg0: i32, %arg1: memref<1x160x256xf32, #tpu.memory_space<vmem>>, %arg2: memref<16x160xf32, #tpu.memory_space<vmem>>, %arg3: memref<16x1xf32, #tpu.memory_space<vmem>>, %arg4: memref<8x16xf32, #tpu.memory_space<vmem>>, %arg5: memref<16x8xf32, #tpu.memory_space<vmem>>, %arg6: memref<1x16x256xf32, #tpu.memory_space<vmem>>) attributes {dimension_semantics = [#tpu.dimension_semantics<parallel>], iteration_bounds = array<i64: 2>, scalar_prefetch = 0 : i64, scratch_operands = 0 : i64, tpu.core_type = #tpu.core_type<tc>, window_params = [{transform_indices = @transform_0, window_bounds = array<i64: 1, 160, 256>}, {pipeline_mode = #tpu.pipeline_mode<synchronous>, transform_indices = @transform_1, window_bounds = array<i64: 16, 160>}, {pipeline_mode = #tpu.pipeline_mode<synchronous>, transform_indices = @transform_2, window_bounds = array<i64: 16, 1>}, {pipeline_mode = #tpu.pipeline_mode<synchronous>, transform_indices = @transform_3, window_bounds = array<i64: 8, 16>}, {pipeline_mode = #tpu.pipeline_mode<synchronous>, transform_indices = @transform_4, window_bounds = array<i64: 16, 8>}, {transform_indices = @transform_5, window_bounds = array<i64: 1, 16, 256>}]} {
    %c0 = arith.constant 0 : index
    %c0_0 = arith.constant 0 : index
    %0 = vector.load %arg2[%c0, %c0_0] : memref<16x160xf32, #tpu.memory_space<vmem>>, vector<16x160xf32>
    %c0_1 = arith.constant 0 : index
    %c0_2 = arith.constant 0 : index
    %1 = vector.load %arg3[%c0_1, %c0_2] : memref<16x1xf32, #tpu.memory_space<vmem>>, vector<16x1xf32>
    %c0_3 = arith.constant 0 : index
    %c0_4 = arith.constant 0 : index
    %2 = vector.load %arg4[%c0_3, %c0_4] : memref<8x16xf32, #tpu.memory_space<vmem>>, vector<8x16xf32>
    %c0_5 = arith.constant 0 : index
    %c0_6 = arith.constant 0 : index
    %3 = vector.load %arg5[%c0_5, %c0_6] : memref<16x8xf32, #tpu.memory_space<vmem>>, vector<16x8xf32>
    %c0_7 = arith.constant 0 : index
    %c0_8 = arith.constant 0 : index
    %c0_9 = arith.constant 0 : index
    %4 = vector.load %arg1[%c0_7, %c0_8, %c0_9] : memref<1x160x256xf32, #tpu.memory_space<vmem>>, vector<1x160x256xf32>
    %5 = vector.shape_cast %4 : vector<1x160x256xf32> to vector<160x256xf32>
    %cst = arith.constant dense<0.000000e+00> : vector<16x256xf32>
    %6 = tpu.matmul %0, %5, %cst {dimension_numbers = #tpu.dot_dimension_numbers<[1], [0], [0], [1], [0, 0, 1, 1], [], []>} : vector<16x160xf32>, vector<160x256xf32>, vector<16x256xf32> -> vector<16x256xf32>
    %7 = vector.broadcast %1 : vector<16x1xf32> to vector<16x256xf32>
    %8 = arith.addf %6, %7 : vector<16x256xf32>
    %cst_10 = arith.constant dense<0.000000e+00> : vector<16xf32>
    %9 = vector.multi_reduction <add>, %8, %cst_10 [1] : vector<16x256xf32> to vector<16xf32>
    %10 = vector.shape_cast %9 : vector<16xf32> to vector<16x1xf32>
    %cst_11 = arith.constant 2.560000e+02 : f32
    %11 = vector.broadcast %cst_11 : f32 to vector<16x1xf32>
    %12 = arith.divf %10, %11 : vector<16x1xf32>
    %13 = vector.shape_cast %12 : vector<16x1xf32> to vector<16x1xf32>
    %14 = vector.broadcast %13 : vector<16x1xf32> to vector<16x128xf32>
    %cst_12 = arith.constant dense<0.000000e+00> : vector<8x128xf32>
    %15 = tpu.matmul %2, %14, %cst_12 {dimension_numbers = #tpu.dot_dimension_numbers<[1], [0], [0], [1], [0, 0, 1, 1], [], []>} : vector<8x16xf32>, vector<16x128xf32>, vector<8x128xf32> -> vector<8x128xf32>
    %cst_13 = arith.constant 0.000000e+00 : f32
    %16 = vector.broadcast %cst_13 : f32 to vector<8x128xf32>
    %17 = arith.maximumf %15, %16 : vector<8x128xf32>
    %cst_14 = arith.constant dense<0.000000e+00> : vector<16x128xf32>
    %18 = tpu.matmul %3, %17, %cst_14 {dimension_numbers = #tpu.dot_dimension_numbers<[1], [0], [0], [1], [0, 0, 1, 1], [], []>} : vector<16x8xf32>, vector<8x128xf32>, vector<16x128xf32> -> vector<16x128xf32>
    %19 = arith.negf %18 : vector<16x128xf32>
    %20 = math.exp %19 : vector<16x128xf32>
    %cst_15 = arith.constant 1.000000e+00 : f32
    %21 = vector.broadcast %cst_15 : f32 to vector<16x128xf32>
    %22 = arith.addf %21, %20 : vector<16x128xf32>
    %23 = arith.divf %21, %22 : vector<16x128xf32>
    %24 = vector.extract_strided_slice %23 {offsets = [0, 0], sizes = [16, 1], strides = [1, 1]} : vector<16x128xf32> to vector<16x1xf32>
    %25 = vector.broadcast %24 : vector<16x1xf32> to vector<16x256xf32>
    %26 = arith.mulf %8, %25 : vector<16x256xf32>
    %c0_16 = arith.constant 0 : index
    %c0_17 = arith.constant 0 : index
    %c0_18 = arith.constant 0 : index
    %27 = vector.load %arg6[%c0_16, %c0_17, %c0_18] : memref<1x16x256xf32, #tpu.memory_space<vmem>>, vector<1x16x256xf32>
    %28 = vector.shape_cast %27 : vector<1x16x256xf32> to vector<16x256xf32>
    %29 = vector.shape_cast %26 : vector<16x256xf32> to vector<1x16x256xf32>
    tpu.vector_store %arg6[%c0_16, %c0_17, %c0_18], %29 {strides = array<i32>} : memref<1x16x256xf32, #tpu.memory_space<vmem>>, vector<1x16x256xf32>,
    return
  }
  func.func @transform_0(%arg0: i32) -> (i32, i32, i32) {
    %c0_i32 = arith.constant 0 : i32
    %c0_i32_0 = arith.constant 0 : i32
    %c0_i32_1 = arith.constant 0 : i32
    return %arg0, %c0_i32, %c0_i32_0 : i32, i32, i32
  }
  func.func @transform_1(%arg0: i32) -> (i32, i32) {
    %c0_i32 = arith.constant 0 : i32
    %c0_i32_0 = arith.constant 0 : i32
    %c0_i32_1 = arith.constant 0 : i32
    return %c0_i32, %c0_i32_0 : i32, i32
  }
  func.func @transform_2(%arg0: i32) -> (i32, i32) {
    %c0_i32 = arith.constant 0 : i32
    %c0_i32_0 = arith.constant 0 : i32
    %c0_i32_1 = arith.constant 0 : i32
    return %c0_i32, %c0_i32_0 : i32, i32
  }
  func.func @transform_3(%arg0: i32) -> (i32, i32) {
    %c0_i32 = arith.constant 0 : i32
    %c0_i32_0 = arith.constant 0 : i32
    %c0_i32_1 = arith.constant 0 : i32
    return %c0_i32, %c0_i32_0 : i32, i32
  }
  func.func @transform_4(%arg0: i32) -> (i32, i32) {
    %c0_i32 = arith.constant 0 : i32
    %c0_i32_0 = arith.constant 0 : i32
    %c0_i32_1 = arith.constant 0 : i32
    return %c0_i32, %c0_i32_0 : i32, i32
  }
  func.func @transform_5(%arg0: i32) -> (i32, i32, i32) {
    %c0_i32 = arith.constant 0 : i32
    %c0_i32_0 = arith.constant 0 : i32
    %c0_i32_1 = arith.constant 0 : i32
    return %arg0, %c0_i32, %c0_i32_0 : i32, i32, i32
  }
}

</mosaic_0001>

<llo_original>
// kernel: tpu_custom_call.1
$region0: #{tpu_custom_call.1}
  #allocation0 [shape = 'u32[]', space=smem, size = 0x4, offset = 0x4, fixed_abs, tag = 'smem constant byte address 0x4 - core index']
  #allocation1 [shape = 'u32[72,128]{1,0:T(1,128)}', space=vmem, size = 0x9000, scoped, tag = 'internal scratch']
  %s0 = inlined_call_operand.hbm [shape: f32[2,160,256], index: 0, kind: input, shape index: {}]
  %s1 = inlined_call_operand.vmem [shape: f32[16,160], index: 1, kind: input, shape index: {}]
  %s2 = inlined_call_operand.vmem [shape: f32[16,1], index: 2, kind: input, shape index: {}]
  %s3 = inlined_call_operand.hbm [shape: f32[8,16], index: 3, kind: input, shape index: {}]
  %s4 = inlined_call_operand.vmem [shape: f32[16,8], index: 4, kind: input, shape index: {}]
  %s5 = inlined_call_operand.hbm [shape: f32[2,16,256], index: 5, kind: output, shape index: {}]
  %s6 = sld [smem:[#allocation0]]
  $region61: #{tpu_custom_call.1} parent=0
    _
  %s8 = ssub.s32 1, %s6
  %s9 = scalar_select 0, %s8, %s6
  $region1: #{tpu_custom_call.1} parent=0
    #allocation2 [shape = 'u8[327680]{0}', space=vmem, size = 0x50000, scoped, tag = 'input window, operand 0']
    #allocation3 [shape = 's32[2]{0}', space=sflag, size = 0x8, scoped, tag = 'scoped memory for tpu_custom_call.1']
    #allocation4 [shape = 's32[2]{0}', space=sflag, size = 0x8, scoped, tag = 'scoped memory for tpu_custom_call.1']
    #allocation5 [shape = 'u8[4096]{0}', space=vmem, size = 0x1000, scoped, tag = 'input window, operand 3, single buffered']
    #allocation6 [shape = 's32[1]{0}', space=sflag, size = 0x4, scoped, tag = 'scoped memory for tpu_custom_call.1']
    #allocation7 [shape = 'u8[32768]{0}', space=vmem, size = 0x8000, scoped, tag = 'output window, operand 0']
    %10 = vsyncpa [#allocation3], 0
    %s11 = scalar_lea.sflag [#allocation3], 1
    %12 = vsyncpa %s11, 0
    %13 = vsyncpa [#allocation6], 0
    %14 = vsyncpa [#allocation4], 0
    %s15 = scalar_lea.sflag [#allocation4], 1
    %16 = vsyncpa %s15, 0
    loop: start=0, step=1, limit=4
    $region2: #{tpu_custom_call.1} parent=1 // loop_pre_header
      _
    $region3: #{tpu_custom_call.1} parent=1 // loop_header
      %s18 = sphi 0, %s22
      %p19 = scmp.ge.s32.totalorder %s18, 4
      %s28 = sphi 0, %s30
      %s31 = sphi 0, %s28
      %s32 = sphi 0, %s31
      %s48 = sphi 0, %s32
      %s52 = sphi 0, %s52
      %s54 = sphi 0, %s52
      %s55 = sphi 0, %s54
      %s69 = sphi 0, %s55
      %s73 = sphi 0, %s73
      %s75 = sphi 0, %s73
      %s76 = sphi 0, %s75
      %s90 = sphi 0, %s76
      %s94 = sphi 0, %s94
      %s96 = sphi 0, %s94
      %s97 = sphi 0, %s96
      %s111 = sphi 0, %s97
      %s115 = sphi 0, %s115
      %s117 = sphi 0, %s115
      %s118 = sphi 0, %s117
      %s132 = sphi 0, %s118
      %s138 = sphi 0, %s140
      %s141 = sphi 0, %s138
      %s142 = sphi 0, %s141
      %s158 = sphi 0, %s142
    $region4: #{tpu_custom_call.1} parent=1 // loop_header_branch
      %21 = sbr.rel (%p19) target = $region8
    $region5: #{tpu_custom_call.1} parent=1 // loop_body
      %s23 = ssub.s32 %s18, 1
      %s24 = ssub.s32 %s18, 2
      %s25 = sadd.s32 %s18, 1
      %s26 = ssub.s32 %s18, %s25
      %p27 = scmp.eq.s32.totalorder %s26, 0
      %s29 = sadd.s32 %s28, 1
      %s30 = scalar_select %p27, %s28, %s29
      %p33 = pneg %p27
      %p34 = scmp.eq.s32.totalorder %s18, 1
      %p35 = por %p33, %p34
      %p36 = scmp.ne.s32.totalorder %s28, %s31
      %p37 = scmp.eq.s32.totalorder %s18, 0
      %p38 = por %p36, %p37
      %p39 = scmp.ne.s32.totalorder %s28, %s31
      %p40 = scmp.eq.s32.totalorder %s23, 1
      %p41 = por %p39, %p40
      %p42 = scmp.ne.s32.totalorder %s31, %s32
      %p43 = scmp.eq.s32.totalorder %s23, 0
      %p44 = por %p42, %p43
      %p45 = scmp.ne.s32.totalorder %s31, %s32
      %p46 = scmp.eq.s32.totalorder %s24, 1
      %p47 = por %p45, %p46
      %p49 = scmp.ne.s32.totalorder %s32, %s48
      %p50 = scmp.eq.s32.totalorder %s24, 0
      %p51 = por %p49, %p50
      %s53 = sadd.s32 %s52, 1
      %p56 = scmp.eq.s32.totalorder %s18, 1
      %p57 = scmp.ne.s32.totalorder %s52, %s54
      %p58 = scmp.eq.s32.totalorder %s18, 0
      %p59 = por %p57, %p58
      %p60 = scmp.ne.s32.totalorder %s52, %s54
      %p61 = scmp.eq.s32.totalorder %s23, 1
      %p62 = por %p60, %p61
      %p63 = scmp.ne.s32.totalorder %s54, %s55
      %p64 = scmp.eq.s32.totalorder %s23, 0
      %p65 = por %p63, %p64
      %p66 = scmp.ne.s32.totalorder %s54, %s55
      %p67 = scmp.eq.s32.totalorder %s24, 1
      %p68 = por %p66, %p67
      %p70 = scmp.ne.s32.totalorder %s55, %s69
      %p71 = scmp.eq.s32.totalorder %s24, 0
      %p72 = por %p70, %p71
      %s74 = sadd.s32 %s73, 1
      %p77 = scmp.eq.s32.totalorder %s18, 1
      %p78 = scmp.ne.s32.totalorder %s73, %s75
      %p79 = scmp.eq.s32.totalorder %s18, 0
      %p80 = por %p78, %p79
      %p81 = scmp.ne.s32.totalorder %s73, %s75
      %p82 = scmp.eq.s32.totalorder %s23, 1
      %p83 = por %p81, %p82
      %p84 = scmp.ne.s32.totalorder %s75, %s76
      %p85 = scmp.eq.s32.totalorder %s23, 0
      %p86 = por %p84, %p85
      %p87 = scmp.ne.s32.totalorder %s75, %s76
      %p88 = scmp.eq.s32.totalorder %s24, 1
      %p89 = por %p87, %p88
      %p91 = scmp.ne.s32.totalorder %s76, %s90
      %p92 = scmp.eq.s32.totalorder %s24, 0
      %p93 = por %p91, %p92
      %s95 = sadd.s32 %s94, 1
      %p98 = scmp.eq.s32.totalorder %s18, 1
      %p99 = scmp.ne.s32.totalorder %s94, %s96
      %p100 = scmp.eq.s32.totalorder %s18, 0
      %p101 = por %p99, %p100
      %p102 = scmp.ne.s32.totalorder %s94, %s96
      %p103 = scmp.eq.s32.totalorder %s23, 1
      %p104 = por %p102, %p103
      %p105 = scmp.ne.s32.totalorder %s96, %s97
      %p106 = scmp.eq.s32.totalorder %s23, 0
      %p107 = por %p105, %p106
      %p108 = scmp.ne.s32.totalorder %s96, %s97
      %p109 = scmp.eq.s32.totalorder %s24, 1
      %p110 = por %p108, %p109
      %p112 = scmp.ne.s32.totalorder %s97, %s111
      %p113 = scmp.eq.s32.totalorder %s24, 0
      %p114 = por %p112, %p113
      %s116 = sadd.s32 %s115, 1
      %p119 = scmp.eq.s32.totalorder %s18, 1
      %p120 = scmp.ne.s32.totalorder %s115, %s117
      %p121 = scmp.eq.s32.totalorder %s18, 0
      %p122 = por %p120, %p121
      %p123 = scmp.ne.s32.totalorder %s115, %s117
      %p124 = scmp.eq.s32.totalorder %s23, 1
      %p125 = por %p123, %p124
      %p126 = scmp.ne.s32.totalorder %s117, %s118
      %p127 = scmp.eq.s32.totalorder %s23, 0
      %p128 = por %p126, %p127
      %p129 = scmp.ne.s32.totalorder %s117, %s118
      %p130 = scmp.eq.s32.totalorder %s24, 1
      %p131 = por %p129, %p130
      %p133 = scmp.ne.s32.totalorder %s118, %s132
      %p134 = scmp.eq.s32.totalorder %s24, 0
      %p135 = por %p133, %p134
      %s136 = ssub.s32 %s18, %s25
      %p137 = scmp.eq.s32.totalorder %s136, 0
      %s139 = sadd.s32 %s138, 1
      %s140 = scalar_select %p137, %s138, %s139
      %p143 = pneg %p137
      %p144 = scmp.eq.s32.totalorder %s18, 1
      %p145 = por %p143, %p144
      %p146 = scmp.ne.s32.totalorder %s138, %s141
      %p147 = scmp.eq.s32.totalorder %s18, 0
      %p148 = por %p146, %p147
      %p149 = scmp.ne.s32.totalorder %s138, %s141
      %p150 = scmp.eq.s32.totalorder %s23, 1
      %p151 = por %p149, %p150
      %p152 = scmp.ne.s32.totalorder %s141, %s142
      %p153 = scmp.eq.s32.totalorder %s23, 0
      %p154 = por %p152, %p153
      %p155 = scmp.ne.s32.totalorder %s141, %s142
      %p156 = scmp.eq.s32.totalorder %s24, 1
      %p157 = por %p155, %p156
      %p159 = scmp.ne.s32.totalorder %s142, %s158
      %p160 = scmp.eq.s32.totalorder %s24, 0
      %p161 = por %p159, %p160
      %p162 = scmp.le.s32.totalorder 1, %s18
      %p163 = scmp.lt.s32.totalorder %s18, 3
      %p164 = pnand %p162, %p163
      %p165 = pneg %p164
      // Predicated region
      $region9: #{tpu_custom_call.1} parent=5 // pred_check
        _
      $region10: #{tpu_custom_call.1} parent=5 // pred_check_branch
        %167 = sbr.rel (%p164) target = $region12
      $region11: #{tpu_custom_call.1} parent=5 // pred_region
        %s168 = ssub.s32 %s18, 1
        // Predicated region
        $region13: #{tpu_custom_call.1} parent=11 // pred_check
          %p169 = pneg %p65
        $region14: #{tpu_custom_call.1} parent=11 // pred_check_branch
          %171 = sbr.rel (%p169) target = $region16
        $region15: #{tpu_custom_call.1} parent=11 // pred_region
          _
        $region16: #{tpu_custom_call.1} parent=11 // pred_fallthru
          _
        // Predicated region
        $region17: #{tpu_custom_call.1} parent=11 // pred_check
          %p172 = pneg %p86
        $region18: #{tpu_custom_call.1} parent=11 // pred_check_branch
          %174 = sbr.rel (%p172) target = $region20
        $region19: #{tpu_custom_call.1} parent=11 // pred_region
          _
        $region20: #{tpu_custom_call.1} parent=11 // pred_fallthru
          _
        // Predicated region
        $region21: #{tpu_custom_call.1} parent=11 // pred_check
          %p175 = pneg %p107
        $region22: #{tpu_custom_call.1} parent=11 // pred_check_branch
          %177 = sbr.rel (%p175) target = $region24
        $region23: #{tpu_custom_call.1} parent=11 // pred_region
          %179 = vsyncadd [#allocation6], 0
          %s181 = sshll.u32 %s3, 4
          %s182 = int_to_ptr.hbm [resolvable:$true] %s181
          %s183 = sshll.u32 [#allocation5], 4
          %s184 = int_to_ptr.vmem [resolvable:$true] %s183
          %186 = dma.hbm_to_vmem [thread:$0]  %s182, 128, %s184, [#allocation6]
        $region24: #{tpu_custom_call.1} parent=11 // pred_fallthru
          _
        // Predicated region
        $region25: #{tpu_custom_call.1} parent=11 // pred_check
          %p187 = pneg %p128
        $region26: #{tpu_custom_call.1} parent=11 // pred_check_branch
          %189 = sbr.rel (%p187) target = $region28
        $region27: #{tpu_custom_call.1} parent=11 // pred_region
          _
        $region28: #{tpu_custom_call.1} parent=11 // pred_fallthru
          _
      $region12: #{tpu_custom_call.1} parent=5 // pred_fallthru
        _
      %p190 = scmp.lt.s32.totalorder %s18, 2
      // Predicated region
      $region29: #{tpu_custom_call.1} parent=5 // pred_check
        %p191 = pneg %p190
      $region30: #{tpu_custom_call.1} parent=5 // pred_check_branch
        %193 = sbr.rel (%p191) target = $region32
      $region31: #{tpu_custom_call.1} parent=5 // pred_region
        // Predicated region
        $region33: #{tpu_custom_call.1} parent=31 // pred_check
          %p194 = pneg %p38
        $region34: #{tpu_custom_call.1} parent=31 // pred_check_branch
          %196 = sbr.rel (%p194) target = $region36
        $region35: #{tpu_custom_call.1} parent=31 // pred_region
          %s197 = sand.u32 %s28, 1
          %s198 = scalar_lea.sflag [#allocation3], %s197
          %s199 = sand.u32 %s28, 1
          %s200 = smul.addr %s199, 320
          %s201 = scalar_lea.vmem [#allocation2], %s200
          %203 = vsyncadd %s198, 0
          %s204 = smul.addr %s18, 40
          %s205 = smul.addr %s204, 8
          %s206 = scalar_lea.hbm %s0, %s205
          %s207 = sshll.u32 %s206, 4
          %s208 = int_to_ptr.hbm [resolvable:$true] %s207
          %s209 = sshll.u32 %s201, 4
          %s210 = int_to_ptr.vmem [resolvable:$true] %s209
          %215 = dma.hbm_to_vmem [thread:$0]  %s208, 5120, %s210, %s198, 256, 256, 16
        $region36: #{tpu_custom_call.1} parent=31 // pred_fallthru
          _
      $region32: #{tpu_custom_call.1} parent=5 // pred_fallthru
        _
      %p216 = scmp.le.s32.totalorder 1, %s18
      %p217 = scmp.lt.s32.totalorder %s18, 3
      %p218 = pnand %p216, %p217
      %p219 = pneg %p218
      // Predicated region
      $region37: #{tpu_custom_call.1} parent=5 // pred_check
        _
      $region38: #{tpu_custom_call.1} parent=5 // pred_check_branch
        %221 = sbr.rel (%p218) target = $region40
      $region39: #{tpu_custom_call.1} parent=5 // pred_region
        %s222 = ssub.s32 %s18, 1
        %s223 = sand.u32 %s31, 1
        %s224 = scalar_lea.sflag [#allocation3], %s223
        %s225 = sand.u32 %s31, 1
        %s226 = smul.addr %s225, 320
        %s227 = scalar_lea.vmem [#allocation2], %s226
        // Predicated region
        $region41: #{tpu_custom_call.1} parent=39 // pred_check
          %p228 = pneg %p44
        $region42: #{tpu_custom_call.1} parent=39 // pred_check_branch
          %230 = sbr.rel (%p228) target = $region44
        $region43: #{tpu_custom_call.1} parent=39 // pred_region
          %232 = dma.done %s224, 5120
        $region44: #{tpu_custom_call.1} parent=39 // pred_fallthru
          _
        // Predicated region
        $region45: #{tpu_custom_call.1} parent=39 // pred_check
          %p233 = pneg %p107
        $region46: #{tpu_custom_call.1} parent=39 // pred_check_branch
          %235 = sbr.rel (%p233) target = $region48
        $region47: #{tpu_custom_call.1} parent=39 // pred_region
          %237 = dma.done [#allocation6], 128
        $region48: #{tpu_custom_call.1} parent=39 // pred_fallthru
          _
        %s238 = sand.u32 %s31, 1
        %s239 = scalar_lea.sflag [#allocation3], %s238
        %s240 = sand.u32 %s31, 1
        %s241 = smul.addr %s240, 320
        %s242 = scalar_lea.vmem [#allocation2], %s241
        %p243 = pneg %p44
        %p244 = pneg %p41
        %p245 = pneg %p65
        %p246 = pneg %p62
        %p247 = pneg %p86
        %p248 = pneg %p83
        %p249 = pneg %p107
        %p250 = pneg %p104
        %p251 = pneg %p128
        %p252 = pneg %p125
        %p253 = pneg %p154
        %p254 = pneg %p151
        %s255 = sand.u32 %s141, 1
        %s256 = scalar_lea.sflag [#allocation4], %s255
        %s257 = sand.u32 %s141, 1
        %s258 = smul.addr %s257, 32
        %s259 = scalar_lea.vmem [#allocation7], %s258
        %v260 = vld [vmem:[%s1] sm:$0xff]
        %v261 = vld [vmem:[%s1 + $0x8] sm:$0xff]
        %v262 = vld [vmem:[%s1 + $0x10] sm:$0xff]
        %v263 = vld [vmem:[%s1 + $0x18] sm:$0xff]
        %v264 = vld [vmem:[%s2] sm:$0xff]
        %v265 = vld [vmem:[%s2 + $0x8] sm:$0xff]
        %v266 = vld [vmem:[#allocation5] sm:$0xff]
        %v267 = vld [vmem:[%s4] sm:$0xff]
        %v268 = vld [vmem:[%s4 + $0x8] sm:$0xff]
        %v269 = vld [vmem:[%s227] sm:$0xff]
        %v270 = vld [vmem:[%s227 + $0x8] sm:$0xff]
        %v271 = vld [vmem:[%s227 + $0x10] sm:$0xff]
        %v272 = vld [vmem:[%s227 + $0x18] sm:$0xff]
        %v273 = vld [vmem:[%s227 + $0x20] sm:$0xff]
        %v274 = vld [vmem:[%s227 + $0x28] sm:$0xff]
        %v275 = vld [vmem:[%s227 + $0x30] sm:$0xff]
        %v276 = vld [vmem:[%s227 + $0x38] sm:$0xff]
        %v277 = vld [vmem:[%s227 + $0x40] sm:$0xff]
        %v278 = vld [vmem:[%s227 + $0x48] sm:$0xff]
        %v279 = vld [vmem:[%s227 + $0x50] sm:$0xff]
        %v280 = vld [vmem:[%s227 + $0x58] sm:$0xff]
        %v281 = vld [vmem:[%s227 + $0x60] sm:$0xff]
        %v282 = vld [vmem:[%s227 + $0x68] sm:$0xff]
        %v283 = vld [vmem:[%s227 + $0x70] sm:$0xff]
        %v284 = vld [vmem:[%s227 + $0x78] sm:$0xff]
        %v285 = vld [vmem:[%s227 + $0x80] sm:$0xff]
        %v286 = vld [vmem:[%s227 + $0x88] sm:$0xff]
        %v287 = vld [vmem:[%s227 + $0x90] sm:$0xff]
        %v288 = vld [vmem:[%s227 + $0x98] sm:$0xff]
        %v289 = vld [vmem:[%s227 + $0xa0] sm:$0xff]
        %v290 = vld [vmem:[%s227 + $0xa8] sm:$0xff]
        %v291 = vld [vmem:[%s227 + $0xb0] sm:$0xff]
        %v292 = vld [vmem:[%s227 + $0xb8] sm:$0xff]
        %v293 = vld [vmem:[%s227 + $0xc0] sm:$0xff]
        %v294 = vld [vmem:[%s227 + $0xc8] sm:$0xff]
        %v295 = vld [vmem:[%s227 + $0xd0] sm:$0xff]
        %v296 = vld [vmem:[%s227 + $0xd8] sm:$0xff]
        %v297 = vld [vmem:[%s227 + $0xe0] sm:$0xff]
        %v298 = vld [vmem:[%s227 + $0xe8] sm:$0xff]
        %v299 = vld [vmem:[%s227 + $0xf0] sm:$0xff]
        %v300 = vld [vmem:[%s227 + $0xf8] sm:$0xff]
        %v301 = vld [vmem:[%s227 + $0x100] sm:$0xff]
        %v302 = vld [vmem:[%s227 + $0x108] sm:$0xff]
        %v303 = vld [vmem:[%s227 + $0x110] sm:$0xff]
        %v304 = vld [vmem:[%s227 + $0x118] sm:$0xff]
        %v305 = vld [vmem:[%s227 + $0x120] sm:$0xff]
        %v306 = vld [vmem:[%s227 + $0x128] sm:$0xff]
        %v307 = vld [vmem:[%s227 + $0x130] sm:$0xff]
        %v308 = vld [vmem:[%s227 + $0x138] sm:$0xff]
        %310 = vset.pattern.permute.xlu0 0
        %311 = vperm.xlu0 %310, %v264
        %v312 = vpop.permute.xlu0 %311
        %315 = vset.pattern.permute.xlu0 0
        %316 = vperm.xlu0 %315, %v265
        %v317 = vpop.permute.xlu0 %316
        %vm319 = vcmask 261120
        %v321 = vsel %vm319, %v261, 0
        %v324 = vsel %vm319, %v263, 0
        %326 = vmatpush.msra.mxu0 %v299
        %327 = vmatpush.msra.mxu0 %v297
        %328 = vmatpush.msra.mxu0 %v295
        %329 = vmatpush.msra.mxu0 %v293
        %330 = vmatpush.msra.mxu0 %v291
        %331 = vmatpush.msra.mxu0 %v289
        %332 = vmatpush.msra.mxu0 %v287
        %333 = vmatpush.msra.mxu0 %v285
        %334 = vmatpush.msra.mxu0 %v283
        %335 = vmatpush.msra.mxu0 %v281
        %336 = vmatpush.msra.mxu0 %v279
        %337 = vmatpush.msra.mxu0 %v277
        %338 = vmatpush.msra.mxu0 %v275
        %339 = vmatpush.msra.mxu0 %v273
        %340 = vmatpush.msra.mxu0 %v271
        %341 = vmatpush.msra.mxu0 %v269
        %342 = vmatmul.f32.gmra.mxu0 %v260
        %v343 = vpop.f32.mrf.mxu0
        %v344 = vadd.f32 %v312, %v343
        %345 = vmatmul.f32.gmra.mxu0 %v262
        %v346 = vpop.f32.mrf.mxu0
        %v347 = vadd.f32 %v317, %v346
        %348 = vdwg.mxu0
        %349 = vmatpush.msra.mxu0 0.0
        %350 = vmatpush.msra.mxu0 0.0
        %351 = vmatpush.msra.mxu0 0.0
        %352 = vmatpush.msra.mxu0 0.0
        %353 = vmatpush.msra.mxu0 0.0
        %354 = vmatpush.msra.mxu0 0.0
        %355 = vmatpush.msra.mxu0 0.0
        %356 = vmatpush.msra.mxu0 0.0
        %357 = vmatpush.msra.mxu0 0.0
        %358 = vmatpush.msra.mxu0 0.0
        %359 = vmatpush.msra.mxu0 0.0
        %360 = vmatpush.msra.mxu0 0.0
        %361 = vmatpush.msra.mxu0 %v307
        %362 = vmatpush.msra.mxu0 %v305
        %363 = vmatpush.msra.mxu0 %v303
        %364 = vmatpush.msra.mxu0 %v301
        %365 = vmatmul.f32.gmra.mxu0 %v321
        %v366 = vpop.f32.mrf.mxu0
        %v367 = vadd.f32 %v344, %v366
        %368 = vmatmul.f32.gmra.mxu0 %v324
        %v369 = vpop.f32.mrf.mxu0
        %v370 = vadd.f32 %v347, %v369
        %371 = vdwg.mxu0
        %372 = vmatpush.msra.mxu0 %v300
        %373 = vmatpush.msra.mxu0 %v298
        %374 = vmatpush.msra.mxu0 %v296
        %375 = vmatpush.msra.mxu0 %v294
        %376 = vmatpush.msra.mxu0 %v292
        %377 = vmatpush.msra.mxu0 %v290
        %378 = vmatpush.msra.mxu0 %v288
        %379 = vmatpush.msra.mxu0 %v286
        %380 = vmatpush.msra.mxu0 %v284
        %381 = vmatpush.msra.mxu0 %v282
        %382 = vmatpush.msra.mxu0 %v280
        %383 = vmatpush.msra.mxu0 %v278
        %384 = vmatpush.msra.mxu0 %v276
        %385 = vmatpush.msra.mxu0 %v274
        %386 = vmatpush.msra.mxu0 %v272
        %387 = vmatpush.msra.mxu0 %v270
        %388 = vmatmul.f32.gmra.mxu0 %v260
        %v389 = vpop.f32.mrf.mxu0
        %v390 = vadd.f32 %v312, %v389
        %391 = vmatmul.f32.gmra.mxu0 %v262
        %v392 = vpop.f32.mrf.mxu0
        %v393 = vadd.f32 %v317, %v392
        %394 = vdwg.mxu0
        %395 = vmatpush.msra.mxu0 0.0
        %396 = vmatpush.msra.mxu0 0.0
        %397 = vmatpush.msra.mxu0 0.0
        %398 = vmatpush.msra.mxu0 0.0
        %399 = vmatpush.msra.mxu0 0.0
        %400 = vmatpush.msra.mxu0 0.0
        %401 = vmatpush.msra.mxu0 0.0
        %402 = vmatpush.msra.mxu0 0.0
        %403 = vmatpush.msra.mxu0 0.0
        %404 = vmatpush.msra.mxu0 0.0
        %405 = vmatpush.msra.mxu0 0.0
        %406 = vmatpush.msra.mxu0 0.0
        %407 = vmatpush.msra.mxu0 %v308
        %408 = vmatpush.msra.mxu0 %v306
        %409 = vmatpush.msra.mxu0 %v304
        %410 = vmatpush.msra.mxu0 %v302
        %411 = vmatmul.f32.gmra.mxu0 %v321
        %v412 = vpop.f32.mrf.mxu0
        %v413 = vadd.f32 %v390, %v412
        %414 = vmatmul.f32.gmra.mxu0 %v324
        %v415 = vpop.f32.mrf.mxu0
        %v416 = vadd.f32 %v393, %v415
        %417 = vdwg.mxu0
        %v418 = vadd.f32 %v367, %v413
        %419 = vadd.xlane.f32.xlu0 %v418
        %v420 = vpop.xlane.xlu0 %419
        %v421 = vadd.f32 %v370, %v416
        %422 = vadd.xlane.f32.xlu0 %v421
        %v423 = vpop.xlane.xlu0 %422
        %v424 = vrcp.pop 256.0
        %v425 = vmul.f32 256.0, %v424
        %v426 = vsub.f32 1.0, %v425
        %v427 = vmul.f32 %v424, %v426
        %v428 = vadd.f32 %v424, %v427
        %vm429 = vweird.f32 %v424
        %v430 = vsel %vm429, %v424, %v428
        %v431 = vmul.f32 %v420, %v430
        %v432 = vmul.f32 %v423, %v430
        %vm433 = vcmask 130048
        %v435 = vsel %vm433, %v266, 0
        %437 = vmatpush.msra.mxu0 0.0
        %438 = vmatpush.msra.mxu0 0.0
        %439 = vmatpush.msra.mxu0 0.0
        %440 = vmatpush.msra.mxu0 0.0
        %441 = vmatpush.msra.mxu0 0.0
        %442 = vmatpush.msra.mxu0 0.0
        %443 = vmatpush.msra.mxu0 0.0
        %444 = vmatpush.msra.mxu0 0.0
        %445 = vmatpush.msra.mxu0 0.0
        %446 = vmatpush.msra.mxu0 0.0
        %447 = vmatpush.msra.mxu0 0.0
        %448 = vmatpush.msra.mxu0 0.0
        %449 = vmatpush.msra.mxu0 0.0
        %450 = vmatpush.msra.mxu0 0.0
        %451 = vmatpush.msra.mxu0 %v432
        %452 = vmatpush.msra.mxu0 %v431
        %453 = vmatmul.f32.gmra.mxu0 %v435
        %v454 = vpop.f32.mrf.mxu0
        %v455 = vadd.f32 0.0, %v454
        %456 = vdwg.mxu0
        %v457 = vmax.f32 %v455, 0.0
        %vm458 = vcmask 64512
        %v460 = vsel %vm458, %v267, 0
        %v463 = vsel %vm458, %v268, 0
        %465 = vmatpush.msra.mxu0 0.0
        %466 = vmatpush.msra.mxu0 0.0
        %467 = vmatpush.msra.mxu0 0.0
        %468 = vmatpush.msra.mxu0 0.0
        %469 = vmatpush.msra.mxu0 0.0
        %470 = vmatpush.msra.mxu0 0.0
        %471 = vmatpush.msra.mxu0 0.0
        %472 = vmatpush.msra.mxu0 0.0
        %473 = vmatpush.msra.mxu0 0.0
        %474 = vmatpush.msra.mxu0 0.0
        %475 = vmatpush.msra.mxu0 0.0
        %476 = vmatpush.msra.mxu0 0.0
        %477 = vmatpush.msra.mxu0 0.0
        %478 = vmatpush.msra.mxu0 0.0
        %479 = vmatpush.msra.mxu0 0.0
        %480 = vmatpush.msra.mxu0 %v457
        %481 = vmatmul.f32.gmra.mxu0 %v460
        %v482 = vpop.f32.mrf.mxu0
        %v483 = vadd.f32 0.0, %v482
        %484 = vmatmul.f32.gmra.mxu0 %v463
        %v485 = vpop.f32.mrf.mxu0
        %v486 = vadd.f32 0.0, %v485
        %487 = vdwg.mxu0
        %v488 = vxor.u32 %v483, 2147483648
        %v489 = vxor.u32 %v486, 2147483648
        %v490 = vmul.f32 %v488, 1.442695
        %v491 = vpow.pop %v490
        %v492 = vmul.f32 %v489, 1.442695
        %v493 = vpow.pop %v492
        %v494 = vadd.f32 %v491, 1.0
        %v495 = vadd.f32 %v493, 1.0
        %v496 = vrcp.pop %v494
        %v497 = vmul.f32 %v494, %v496
        %v498 = vsub.f32 1.0, %v497
        %v499 = vmul.f32 %v496, %v498
        %v500 = vadd.f32 %v496, %v499
        %vm501 = vweird.f32 %v494
        %vm502 = vweird.f32 %v496
        %vm503 = vmor %vm501, %vm502
        %v504 = vsel %vm503, %v496, %v500
        %v505 = vand.u32 2147483647, %v494
        %vm506 = vcmp.eq.f32.partialorder %v505, 8.507059e+37
        %v507 = vand.u32 %v494, 2147483648
        %v508 = vor.u32 1.1754944e-38, %v507
        %v509 = vsel %vm506, %v508, %v504
        %v510 = vmul.f32 1.0, %v509
        %v511 = vrcp.pop %v495
        %v512 = vmul.f32 %v495, %v511
        %v513 = vsub.f32 1.0, %v512
        %v514 = vmul.f32 %v511, %v513
        %v515 = vadd.f32 %v511, %v514
        %vm516 = vweird.f32 %v495
        %vm517 = vweird.f32 %v511
        %vm518 = vmor %vm516, %vm517
        %v519 = vsel %vm518, %v511, %v515
        %v520 = vand.u32 2147483647, %v495
        %vm521 = vcmp.eq.f32.partialorder %v520, 8.507059e+37
        %v522 = vand.u32 %v495, 2147483648
        %v523 = vor.u32 1.1754944e-38, %v522
        %v524 = vsel %vm521, %v523, %v519
        %v525 = vmul.f32 1.0, %v524
        %527 = vset.pattern.permute.xlu0 0
        %528 = vperm.xlu0 %527, %v510
        %v529 = vpop.permute.xlu0 %528
        %532 = vset.pattern.permute.xlu0 0
        %533 = vperm.xlu0 %532, %v525
        %v534 = vpop.permute.xlu0 %533
        %v536 = vmul.f32 %v367, %v529
        %v537 = vmul.f32 %v413, %v529
        %v538 = vmul.f32 %v370, %v534
        %v539 = vmul.f32 %v416, %v534
        %540 = vst [vmem:[%s259] sm:$0xff] %v536
        %541 = vst [vmem:[%s259 + $0x8] sm:$0xff] %v537
        %542 = vst [vmem:[%s259 + $0x10] sm:$0xff] %v538
        %543 = vst [vmem:[%s259 + $0x18] sm:$0xff] %v539
        %s544 = sand.u32 %s141, 1
        %s545 = scalar_lea.sflag [#allocation4], %s544
        %s546 = sand.u32 %s141, 1
        %s547 = smul.addr %s546, 32
        %s548 = scalar_lea.vmem [#allocation7], %s547
        // Predicated region
        $region49: #{tpu_custom_call.1} parent=39 // pred_check
          %p549 = pneg %p151
        $region50: #{tpu_custom_call.1} parent=39 // pred_check_branch
          %551 = sbr.rel (%p549) target = $region52
        $region51: #{tpu_custom_call.1} parent=39 // pred_region
          %553 = vsyncadd %s545, 0
          %s554 = smul.addr %s23, 4
          %s555 = smul.addr %s554, 8
          %s556 = scalar_lea.hbm %s5, %s555
          %s557 = sshll.u32 %s548, 4
          %s558 = int_to_ptr.vmem [resolvable:$true] %s557
          %s559 = sshll.u32 %s556, 4
          %s560 = int_to_ptr.hbm [resolvable:$true] %s559
          %565 = dma.vmem_to_hbm [thread:$0]  %s558, 512, %s560, %s545, 256, 256, 16
        $region52: #{tpu_custom_call.1} parent=39 // pred_fallthru
          _
      $region40: #{tpu_custom_call.1} parent=5 // pred_fallthru
        _
      %p566 = scmp.le.s32.totalorder 2, %s18
      // Predicated region
      $region53: #{tpu_custom_call.1} parent=5 // pred_check
        %p567 = pneg %p566
      $region54: #{tpu_custom_call.1} parent=5 // pred_check_branch
        %569 = sbr.rel (%p567) target = $region56
      $region55: #{tpu_custom_call.1} parent=5 // pred_region
        %s570 = ssub.s32 %s18, 2
        // Predicated region
        $region57: #{tpu_custom_call.1} parent=55 // pred_check
          %p571 = pneg %p157
        $region58: #{tpu_custom_call.1} parent=55 // pred_check_branch
          %573 = sbr.rel (%p571) target = $region60
        $region59: #{tpu_custom_call.1} parent=55 // pred_region
          %s574 = sand.u32 %s142, 1
          %s575 = scalar_lea.sflag [#allocation4], %s574
          %s576 = sand.u32 %s142, 1
          %s577 = smul.addr %s576, 32
          %s578 = scalar_lea.vmem [#allocation7], %s577
          %580 = dma.done %s575, 512
        $region60: #{tpu_custom_call.1} parent=55 // pred_fallthru
          _
      $region56: #{tpu_custom_call.1} parent=5 // pred_fallthru
        _
    $region6: #{tpu_custom_call.1} parent=1 // loop_footer
      %s22 = sadd.s32 1, %s18
    $region7: #{tpu_custom_call.1} parent=1 // loop_footer_branch
      %17 = sbr.rel target = $region3
    $region8: #{tpu_custom_call.1} parent=1 // loop_exit
      _
    %581 = vsyncpa [#allocation3], 1
    %s582 = scalar_lea.sflag [#allocation3], 1
    %583 = vsyncpa %s582, 1
    %584 = vsyncpa [#allocation6], 1
    %585 = vsyncpa [#allocation4], 1
    %s586 = scalar_lea.sflag [#allocation4], 1
    %587 = vsyncpa %s586, 1

</llo_original>
